<compile_context>
chip_gen: v7x
topology: tpu7x:2x2x1
jax: 0.10.0
libtpu: 0.0.40
codegen_flags: <defaults>
</compile_context>

<pallas_src>
import jax
import jax.numpy as jnp
from jax.experimental import pallas as pl
from jax.experimental.pallas import tpu as pltpu


def _round_up(n, m):
    return ((n + m - 1) // m) * m


def _critic_kernel(x_ref, w1_ref, b1_ref, w2_ref, b2_ref, w3_ref, b3_ref, o_ref):
    # In-kernel operand cast (VPU, hidden under DMA/MXU) instead of a wrapper-side
    # XLA cast that would cost a full extra HBM pass over x.
    x = x_ref[...].astype(w1_ref.dtype)

    # Layer 1: (TILE_B, K) @ (K, Hp) on the MXU, f32 accumulation; bias + ReLU stay
    # f32 on the VPU (safe on v5e, which has no bf16 VPU path).
    h1 = jnp.dot(x, w1_ref[...], preferred_element_type=jnp.float32)
    h1 = jnp.maximum(h1 + b1_ref[...], 0.0)

    # Layer 2: cast only the MXU operand to the weight dtype (bf16 or f32);
    # elementwise work remains f32.
    h2 = jnp.dot(h1.astype(w2_ref.dtype), w2_ref[...],
                 preferred_element_type=jnp.float32)
    h2 = jnp.maximum(h2 + b2_ref[...], 0.0)

    # Layer 3: output width is 1 -> skip the MXU. VPU multiply by the (1, Hp) weight
    # row, XLU lane reduction, scalar bias from SMEM.
    v = jnp.sum(h2 * w3_ref[...], axis=-1, keepdims=True)  # (TILE_B, 1)
    o_ref[...] = (v + b3_ref[0]).astype(o_ref.dtype)


def pack_params(params, compute_dtype=jnp.float32):
    """Re-lay out PyTorch-style params for the kernel.

    - hidden dim zero-padded to a multiple of 128 lanes (exact padding),
    - w3 stored as a (1, Hp) row (VPU path), b3 as a (1,) SMEM scalar,
    - w1/w2 cast to `compute_dtype`: f32 for exact PyTorch parity, bf16 for the
      MXU fast path (recommended on v5e/v6e/v7x alike; accumulation stays f32).
    """
    w1, b1, w2, b2, w3, b3 = params
    K, H = w1.shape
    Hp = _round_up(H, 128)
    ph = Hp - H
    w1p = jnp.pad(w1, ((0, 0), (0, ph))).astype(compute_dtype)              # (K, Hp)
    b1p = jnp.pad(b1, ((0, 0), (0, ph))).astype(jnp.float32)                # (1, Hp)
    w2p = jnp.pad(w2, ((0, ph), (0, ph))).astype(compute_dtype)             # (Hp, Hp)
    b2p = jnp.pad(b2, ((0, 0), (0, ph))).astype(jnp.float32)                # (1, Hp)
    w3p = jnp.pad(w3.reshape(1, H), ((0, 0), (0, ph))).astype(jnp.float32)  # (1, Hp)
    b3p = b3.reshape(1).astype(jnp.float32)                                 # (1,)
    return (w1p, b1p, w2p, b2p, w3p, b3p)


def critic_forward(x, packed_params, *, tile_b=1024, vmem_limit_bytes=None):
    """Fused MLP critic. x: (B, input_dim) f32 (or bf16) -> (B, 1) f32.

    tile_b: rows per grid step. 1024 amortizes the ~0.35 us/step overhead and keeps the
    per-step VMEM footprint around ~3 MiB (far under every generation's scoped default).
    If you push tile_b to 4096+, pass vmem_limit_bytes explicitly (e.g. 48<<20).
    """
    w1, b1, w2, b2, w3, b3 = packed_params
    B, K = x.shape

    # Sublane granularity of the streamed x block depends on its dtype
    # (f32 -> 8, bf16 -> 16, int8/fp8 -> 32).
    mult = max(8, 32 // jnp.dtype(x.dtype).itemsize)

    # Cap the tile at ceil(B/2) so the grid has >= 2 steps whenever it can:
    # keeps both v7x TensorCores busy (harmless on single-TC v5e/v6e).
    cap = _round_up(max(pl.cdiv(B, 2), mult), mult)
    tb = min(_round_up(tile_b, mult), cap)
    grid = (pl.cdiv(B, tb),)  # partial tail block handled by masked boundary writeback

    resident = lambda a: pl.BlockSpec(a.shape, lambda i: (0, 0))  # stays in VMEM

    out = pl.pallas_call(
        _critic_kernel,
        out_shape=jax.ShapeDtypeStruct((B, 1), jnp.float32),
        grid=grid,
        in_specs=[
            pl.BlockSpec((tb, K), lambda i: (i, 0)),            # x rows stream in
            resident(w1), resident(b1),
            resident(w2), resident(b2),
            resident(w3),
            pl.BlockSpec(memory_space=pltpu.MemorySpace.SMEM),  # b3 scalar
        ],
        out_specs=pl.BlockSpec((tb, 1), lambda i: (i, 0)),
        compiler_params=pltpu.CompilerParams(
            dimension_semantics=("parallel",),   # shard batch across TCs on v7x
            vmem_limit_bytes=vmem_limit_bytes,
        ),
    )(x, w1, b1, w2, b2, w3, b3)
    return out


def init_params(key, input_dim, hidden_dim):
    """PyTorch nn.Linear default init: U(-1/sqrt(fan_in), 1/sqrt(fan_in)).
    Weights stored as (in, out) (transposed vs. torch's (out, in))."""
    def linear(key, fan_in, fan_out):
        kw, kb = jax.random.split(key)
        bound = 1.0 / jnp.sqrt(fan_in)
        w = jax.random.uniform(kw, (fan_in, fan_out), jnp.float32, -bound, bound)
        b = jax.random.uniform(kb, (1, fan_out), jnp.float32, -bound, bound)
        return w, b

    k1, k2, k3 = jax.random.split(key, 3)
    w1, b1 = linear(k1, input_dim, hidden_dim)
    w2, b2 = linear(k2, hidden_dim, hidden_dim)
    w3, b3 = linear(k3, hidden_dim, 1)
    return (w1, b1, w2, b2, w3, b3)


def reference_forward(x, params):
    """Plain-JAX reference of the PyTorch forward, for verification."""
    w1, b1, w2, b2, w3, b3 = params
    h = jnp.maximum(x @ w1 + b1, 0.0)
    h = jnp.maximum(h @ w2 + b2, 0.0)
    return h @ w3 + b3


if __name__ == "__main__":
    # Small shapes consistent with the module: batch = n_envs, obs dim, hidden size.
    batch = 8
    input_dim = 16
    hidden_dim = 32

    key = jax.random.PRNGKey(0)
    kx, kp = jax.random.split(key)
    x = jax.random.normal(kx, (batch, input_dim), dtype=jnp.float32)
    params = init_params(kp, input_dim, hidden_dim)
    ref = reference_forward(x, params)

    # f32 path: exact parity with the PyTorch forward.
    packed_f32 = pack_params(params, jnp.float32)
    value = jax.block_until_ready(critic_forward(x, packed_f32))
    assert value.shape == (batch, 1), value.shape
    assert jnp.allclose(value, ref, atol=1e-5, rtol=1e-5), "f32 mismatch vs reference"

    # bf16 weight path (recommended on v5e/v6e/v7x): x stays f32 in HBM, the kernel
    # casts the operand in VMEM; f32 accumulation, so tolerance only reflects
    # bf16 weight rounding.
    packed_bf16 = pack_params(params, jnp.bfloat16)
    value_bf16 = jax.block_until_ready(critic_forward(x, packed_bf16))
    assert value_bf16.shape == (batch, 1), value_bf16.shape
    assert jnp.allclose(value_bf16, ref, atol=1e-1, rtol=1e-1), "bf16 mismatch vs reference"

    # Batch not a multiple of the tile: exercises the ceil(B/2) tile cap (2-step grid
    # for v7x megacore) and the masked boundary writeback on the tail block.
    x_mid = jax.random.normal(kx, (1000, input_dim), dtype=jnp.float32)
    v_mid = jax.block_until_ready(critic_forward(x_mid, packed_f32))
    assert v_mid.shape == (1000, 1), v_mid.shape
    assert jnp.allclose(v_mid, reference_forward(x_mid, params), atol=1e-5, rtol=1e-5), \
        "capped-tile / boundary-block mismatch vs reference"

    # Larger batch: multiple full 1024-row tiles plus a ragged tail (no wrapper pad).
    x_big = jax.random.normal(kx, (4100, input_dim), dtype=jnp.float32)
    v_big = jax.block_until_ready(critic_forward(x_big, packed_f32, tile_b=1024))
    assert v_big.shape == (4100, 1), v_big.shape
    assert jnp.allclose(v_big, reference_forward(x_big, params), atol=1e-5, rtol=1e-5), \
        "tiled-batch mismatch vs reference"

    print("KERNEL_OK")
</pallas_src>

<mosaic_0001>
module attributes {stable_mosaic.version = 11 : i64} {
  func.func @_critic_kernel(%arg0: i32, %arg1: memref<8x16xf32, #tpu.memory_space<vmem>>, %arg2: memref<16x128xf32, #tpu.memory_space<vmem>>, %arg3: memref<1x128xf32, #tpu.memory_space<vmem>>, %arg4: memref<128x128xf32, #tpu.memory_space<vmem>>, %arg5: memref<1x128xf32, #tpu.memory_space<vmem>>, %arg6: memref<1x128xf32, #tpu.memory_space<vmem>>, %arg7: memref<1xf32, #tpu.memory_space<smem>>, %arg8: memref<8x1xf32, #tpu.memory_space<vmem>>) attributes {dimension_semantics = [#tpu.dimension_semantics<parallel>], iteration_bounds = array<i64: 1>, scalar_prefetch = 0 : i64, scratch_operands = 0 : i64, tpu.core_type = #tpu.core_type<tc>, window_params = [{transform_indices = @transform_0, window_bounds = array<i64: 8, 16>}, {pipeline_mode = #tpu.pipeline_mode<synchronous>, transform_indices = @transform_1, window_bounds = array<i64: 16, 128>}, {pipeline_mode = #tpu.pipeline_mode<synchronous>, transform_indices = @transform_2, window_bounds = array<i64: 1, 128>}, {pipeline_mode = #tpu.pipeline_mode<synchronous>, transform_indices = @transform_3, window_bounds = array<i64: 128, 128>}, {pipeline_mode = #tpu.pipeline_mode<synchronous>, transform_indices = @transform_4, window_bounds = array<i64: 1, 128>}, {pipeline_mode = #tpu.pipeline_mode<synchronous>, transform_indices = @transform_5, window_bounds = array<i64: 1, 128>}, {transform_indices = @transform_6, window_bounds = array<i64: 1>}, {transform_indices = @transform_7, window_bounds = array<i64: 8, 1>}]} {
    %c0 = arith.constant 0 : index
    %c0_0 = arith.constant 0 : index
    %0 = vector.load %arg1[%c0, %c0_0] : memref<8x16xf32, #tpu.memory_space<vmem>>, vector<8x16xf32>
    %c0_1 = arith.constant 0 : index
    %c0_2 = arith.constant 0 : index
    %1 = vector.load %arg2[%c0_1, %c0_2] : memref<16x128xf32, #tpu.memory_space<vmem>>, vector<16x128xf32>
    %cst = arith.constant dense<0.000000e+00> : vector<8x128xf32>
    %2 = tpu.matmul %0, %1, %cst {dimension_numbers = #tpu.dot_dimension_numbers<[1], [0], [0], [1], [0, 0, 1, 1], [], []>} : vector<8x16xf32>, vector<16x128xf32>, vector<8x128xf32> -> vector<8x128xf32>
    %c0_3 = arith.constant 0 : index
    %c0_4 = arith.constant 0 : index
    %3 = vector.load %arg3[%c0_3, %c0_4] : memref<1x128xf32, #tpu.memory_space<vmem>>, vector<1x128xf32>
    %4 = vector.broadcast %3 : vector<1x128xf32> to vector<8x128xf32>
    %5 = arith.addf %2, %4 : vector<8x128xf32>
    %cst_5 = arith.constant 0.000000e+00 : f32
    %6 = vector.broadcast %cst_5 : f32 to vector<8x128xf32>
    %7 = arith.maximumf %5, %6 : vector<8x128xf32>
    %c0_6 = arith.constant 0 : index
    %c0_7 = arith.constant 0 : index
    %8 = vector.load %arg4[%c0_6, %c0_7] : memref<128x128xf32, #tpu.memory_space<vmem>>, vector<128x128xf32>
    %cst_8 = arith.constant dense<0.000000e+00> : vector<8x128xf32>
    %9 = tpu.matmul %7, %8, %cst_8 {dimension_numbers = #tpu.dot_dimension_numbers<[1], [0], [0], [1], [0, 0, 1, 1], [], []>} : vector<8x128xf32>, vector<128x128xf32>, vector<8x128xf32> -> vector<8x128xf32>
    %c0_9 = arith.constant 0 : index
    %c0_10 = arith.constant 0 : index
    %10 = vector.load %arg5[%c0_9, %c0_10] : memref<1x128xf32, #tpu.memory_space<vmem>>, vector<1x128xf32>
    %11 = vector.broadcast %10 : vector<1x128xf32> to vector<8x128xf32>
    %12 = arith.addf %9, %11 : vector<8x128xf32>
    %cst_11 = arith.constant 0.000000e+00 : f32
    %13 = vector.broadcast %cst_11 : f32 to vector<8x128xf32>
    %14 = arith.maximumf %12, %13 : vector<8x128xf32>
    %c0_12 = arith.constant 0 : index
    %c0_13 = arith.constant 0 : index
    %15 = vector.load %arg6[%c0_12, %c0_13] : memref<1x128xf32, #tpu.memory_space<vmem>>, vector<1x128xf32>
    %16 = vector.broadcast %15 : vector<1x128xf32> to vector<8x128xf32>
    %17 = arith.mulf %14, %16 : vector<8x128xf32>
    %cst_14 = arith.constant dense<0.000000e+00> : vector<8xf32>
    %18 = vector.multi_reduction <add>, %17, %cst_14 [1] : vector<8x128xf32> to vector<8xf32>
    %19 = vector.shape_cast %18 : vector<8xf32> to vector<8x1xf32>
    %c0_15 = arith.constant 0 : index
    %20 = memref.load %arg7[%c0_15] : memref<1xf32, #tpu.memory_space<smem>>
    %21 = vector.broadcast %20 : f32 to vector<8x1xf32>
    %22 = arith.addf %19, %21 : vector<8x1xf32>
    %c0_16 = arith.constant 0 : index
    %c0_17 = arith.constant 0 : index
    %23 = vector.load %arg8[%c0_16, %c0_17] : memref<8x1xf32, #tpu.memory_space<vmem>>, vector<8x1xf32>
    tpu.vector_store %arg8[%c0_16, %c0_17], %22 {strides = array<i32>} : memref<8x1xf32, #tpu.memory_space<vmem>>, vector<8x1xf32>,
    return
  }
  func.func @transform_0(%arg0: i32) -> (i32, i32) {
    %c0_i32 = arith.constant 0 : i32
    %c0_i32_0 = arith.constant 0 : i32
    return %arg0, %c0_i32 : i32, i32
  }
  func.func @transform_1(%arg0: i32) -> (i32, i32) {
    %c0_i32 = arith.constant 0 : i32
    %c0_i32_0 = arith.constant 0 : i32
    %c0_i32_1 = arith.constant 0 : i32
    return %c0_i32, %c0_i32_0 : i32, i32
  }
  func.func @transform_2(%arg0: i32) -> (i32, i32) {
    %c0_i32 = arith.constant 0 : i32
    %c0_i32_0 = arith.constant 0 : i32
    %c0_i32_1 = arith.constant 0 : i32
    return %c0_i32, %c0_i32_0 : i32, i32
  }
  func.func @transform_3(%arg0: i32) -> (i32, i32) {
    %c0_i32 = arith.constant 0 : i32
    %c0_i32_0 = arith.constant 0 : i32
    %c0_i32_1 = arith.constant 0 : i32
    return %c0_i32, %c0_i32_0 : i32, i32
  }
  func.func @transform_4(%arg0: i32) -> (i32, i32) {
    %c0_i32 = arith.constant 0 : i32
    %c0_i32_0 = arith.constant 0 : i32
    %c0_i32_1 = arith.constant 0 : i32
    return %c0_i32, %c0_i32_0 : i32, i32
  }
  func.func @transform_5(%arg0: i32) -> (i32, i32) {
    %c0_i32 = arith.constant 0 : i32
    %c0_i32_0 = arith.constant 0 : i32
    %c0_i32_1 = arith.constant 0 : i32
    return %c0_i32, %c0_i32_0 : i32, i32
  }
  func.func @transform_6(%arg0: i32) -> i32 {
    %c0_i32 = arith.constant 0 : i32
    %c0_i32_0 = arith.constant 0 : i32
    return %c0_i32 : i32
  }
  func.func @transform_7(%arg0: i32) -> (i32, i32) {
    %c0_i32 = arith.constant 0 : i32
    %c0_i32_0 = arith.constant 0 : i32
    return %arg0, %c0_i32 : i32, i32
  }
}

</mosaic_0001>

<llo_original>
// kernel: tpu_custom_call.1
$region0: #{tpu_custom_call.1}
  #allocation0 [shape = 'u32[]', space=smem, size = 0x4, offset = 0x4, fixed_abs, tag = 'smem constant byte address 0x4 - core index']
  #allocation1 [shape = 'u32[144,128]{1,0:T(1,128)}', space=vmem, size = 0x12000, scoped, tag = 'internal scratch']
  #allocation2 [shape = 'f32[1]{0:T(128)S(6)}', space=smem, size = 0x200, scoped, tag = 'scoped memory for tpu_custom_call.1']
  %s0 = inlined_call_operand.hbm [shape: f32[8,16], index: 0, kind: input, shape index: {}]
  %s1 = inlined_call_operand.hbm [shape: f32[16,128], index: 1, kind: input, shape index: {}]
  %s2 = inlined_call_operand.vmem [shape: f32[1,128], index: 2, kind: input, shape index: {}]
  %s3 = inlined_call_operand.hbm [shape: f32[128,128], index: 3, kind: input, shape index: {}]
  %s4 = inlined_call_operand.vmem [shape: f32[1,128], index: 4, kind: input, shape index: {}]
  %s5 = inlined_call_operand.vmem [shape: f32[1,128], index: 5, kind: input, shape index: {}]
  %s6 = inlined_call_operand.<no memory space> [shape: f32[1], index: 6, kind: input, shape index: {}]
  %s7 = inlined_call_operand.vmem [shape: f32[8,1], index: 7, kind: output, shape index: {}]
  %s8 = sld [smem:[#allocation0]]
  $region50: #{tpu_custom_call.1} parent=0
    _
  %s10 = ssub.s32 1, %s8
  %s11 = scalar_select 0, %s10, %s8
  %12 = sst [smem:[#allocation2]] %s6
  $region1: #{tpu_custom_call.1} parent=0
    #allocation3 [shape = 'u8[4096]{0}', space=vmem, size = 0x1000, scoped, tag = 'input window, operand 0, single buffered']
    #allocation4 [shape = 's32[1]{0}', space=sflag, size = 0x4, scoped, tag = 'scoped memory for tpu_custom_call.1']
    #allocation5 [shape = 'u8[8192]{0}', space=vmem, size = 0x2000, scoped, tag = 'input window, operand 1, single buffered']
    #allocation6 [shape = 's32[1]{0}', space=sflag, size = 0x4, scoped, tag = 'scoped memory for tpu_custom_call.1']
    #allocation7 [shape = 'u8[65536]{0}', space=vmem, size = 0x10000, scoped, tag = 'input window, operand 3, single buffered']
    %13 = vsyncpa [#allocation4], 0
    %14 = vsyncpa [#allocation6], 0
    // Predicated region
    $region2: #{tpu_custom_call.1} parent=1 // pred_check
      _
    $region3: #{tpu_custom_call.1} parent=1 // pred_check_branch
      %16 = sbr.rel (0) target = $region5
    $region4: #{tpu_custom_call.1} parent=1 // pred_region
      %s18 = ssub.s32 128, 128
      %19 = vsyncadd [#allocation4], %s18
      %s21 = sshll.u32 [#allocation3], 4
      %s22 = int_to_ptr.vmem [resolvable:$true] %s21
      %24 = dma.hbm_to_vmem [thread:$0]  %s0, 128, %s22, [#allocation4]
    $region5: #{tpu_custom_call.1} parent=1 // pred_fallthru
      _
    // Predicated region
    $region6: #{tpu_custom_call.1} parent=1 // pred_check
      _
    $region7: #{tpu_custom_call.1} parent=1 // pred_check_branch
      %26 = sbr.rel (0) target = $region9
    $region8: #{tpu_custom_call.1} parent=1 // pred_region
      %s28 = ssub.s32 256, 256
      %29 = vsyncadd [#allocation6], %s28
      %s30 = sshll.u32 [#allocation5], 4
      %s31 = int_to_ptr.vmem [resolvable:$true] %s30
      %36 = dma.hbm_to_vmem [thread:$0]  %s1, 256, %s31, [#allocation6], 128, 128, 8
    $region9: #{tpu_custom_call.1} parent=1 // pred_fallthru
      _
    // Predicated region
    $region10: #{tpu_custom_call.1} parent=1 // pred_check
      _
    $region11: #{tpu_custom_call.1} parent=1 // pred_check_branch
      %38 = sbr.rel (0) target = $region13
    $region12: #{tpu_custom_call.1} parent=1 // pred_region
      _
    $region13: #{tpu_custom_call.1} parent=1 // pred_fallthru
      _
    // Predicated region
    $region14: #{tpu_custom_call.1} parent=1 // pred_check
      _
    $region15: #{tpu_custom_call.1} parent=1 // pred_check_branch
      %40 = sbr.rel (0) target = $region17
    $region16: #{tpu_custom_call.1} parent=1 // pred_region
      %s42 = ssub.s32 2048, 2048
      %43 = vsyncadd [#allocation6], %s42
      %s44 = sshll.u32 [#allocation7], 4
      %s45 = int_to_ptr.vmem [resolvable:$true] %s44
      %50 = dma.hbm_to_vmem [thread:$0]  %s3, 2048, %s45, [#allocation6], 128, 128, 8
    $region17: #{tpu_custom_call.1} parent=1 // pred_fallthru
      _
    // Predicated region
    $region18: #{tpu_custom_call.1} parent=1 // pred_check
      _
    $region19: #{tpu_custom_call.1} parent=1 // pred_check_branch
      %52 = sbr.rel (0) target = $region21
    $region20: #{tpu_custom_call.1} parent=1 // pred_region
      _
    $region21: #{tpu_custom_call.1} parent=1 // pred_fallthru
      _
    // Predicated region
    $region22: #{tpu_custom_call.1} parent=1 // pred_check
      _
    $region23: #{tpu_custom_call.1} parent=1 // pred_check_branch
      %54 = sbr.rel (0) target = $region25
    $region24: #{tpu_custom_call.1} parent=1 // pred_region
      _
    $region25: #{tpu_custom_call.1} parent=1 // pred_fallthru
      _
    // Predicated region
    $region26: #{tpu_custom_call.1} parent=1 // pred_check
      _
    $region27: #{tpu_custom_call.1} parent=1 // pred_check_branch
      %56 = sbr.rel (0) target = $region29
    $region28: #{tpu_custom_call.1} parent=1 // pred_region
      _
    $region29: #{tpu_custom_call.1} parent=1 // pred_fallthru
      _
    // Predicated region
    $region30: #{tpu_custom_call.1} parent=1 // pred_check
      _
    $region31: #{tpu_custom_call.1} parent=1 // pred_check_branch
      %58 = sbr.rel (0) target = $region33
    $region32: #{tpu_custom_call.1} parent=1 // pred_region
      %59 = dma.done [#allocation4], 128
    $region33: #{tpu_custom_call.1} parent=1 // pred_fallthru
      _
    // Predicated region
    $region34: #{tpu_custom_call.1} parent=1 // pred_check
      _
    $region35: #{tpu_custom_call.1} parent=1 // pred_check_branch
      %61 = sbr.rel (0) target = $region37
    $region36: #{tpu_custom_call.1} parent=1 // pred_region
      %62 = dma.done [#allocation6], 256
    $region37: #{tpu_custom_call.1} parent=1 // pred_fallthru
      _
    // Predicated region
    $region38: #{tpu_custom_call.1} parent=1 // pred_check
      _
    $region39: #{tpu_custom_call.1} parent=1 // pred_check_branch
      %64 = sbr.rel (0) target = $region41
    $region40: #{tpu_custom_call.1} parent=1 // pred_region
      %65 = dma.done [#allocation6], 2048
    $region41: #{tpu_custom_call.1} parent=1 // pred_fallthru
      _
    %v66 = vld [vmem:[#allocation3] sm:$0xff]
    %v67 = vld [vmem:[#allocation5] sm:$0xff]
    %v68 = vld [vmem:[#allocation5 + $0x8] sm:$0xff]
    %v69 = vld [vmem:[%s2] sm:$0x1]
    %v71 = vlaneseq
    %v72 = vshrl.u32 %v71, 7
    %v73 = vsub.s32 0, %v72
    %v74 = vrot.slane %v69, %v73
    %vm76 = vcmask 130048
    %v78 = vsel %vm76, %v66, 0
    %80 = vmatprep.subr.mxu0 0.0
    %81 = vmatpush1.msra.mxu0 %v67
    %82 = vmatprep.subr.mxu0 0.0
    %83 = vmatpush1.msra.mxu0 %v68
    %84 = vmatprep.subr.mxu0 0.0
    %85 = vmatpush1.msra.mxu0 0.0
    %86 = vmatprep.subr.mxu0 0.0
    %87 = vmatpush1.msra.mxu0 0.0
    %88 = vmatprep.subr.mxu0 0.0
    %89 = vmatpush1.msra.mxu0 0.0
    %90 = vmatprep.subr.mxu0 0.0
    %91 = vmatpush1.msra.mxu0 0.0
    %92 = vmatprep.subr.mxu0 0.0
    %93 = vmatpush1.msra.mxu0 0.0
    %94 = vmatprep.subr.mxu0 0.0
    %95 = vmatpush1.msra.mxu0 0.0
    %96 = vmatprep.subr.mxu0 0.0
    %97 = vmatpush1.msra.mxu0 0.0
    %98 = vmatprep.subr.mxu0 0.0
    %99 = vmatpush1.msra.mxu0 0.0
    %100 = vmatprep.subr.mxu0 0.0
    %101 = vmatpush1.msra.mxu0 0.0
    %102 = vmatprep.subr.mxu0 0.0
    %103 = vmatpush1.msra.mxu0 0.0
    %104 = vmatprep.subr.mxu0 0.0
    %105 = vmatpush1.msra.mxu0 0.0
    %106 = vmatprep.subr.mxu0 0.0
    %107 = vmatpush1.msra.mxu0 0.0
    %108 = vmatprep.subr.mxu0 0.0
    %109 = vmatpush1.msra.mxu0 0.0
    %110 = vmatprep.subr.mxu0 0.0
    %111 = vmatpush1.msra.mxu0 0.0
    %112 = vmatprep.subr.mxu0 0.0
    %113 = vmatpush1.msra.mxu0 0.0
    %114 = vmatprep.subr.mxu0 0.0
    %115 = vmatpush1.msra.mxu0 0.0
    %116 = vmatprep.subr.mxu0 0.0
    %117 = vmatpush1.msra.mxu0 0.0
    %118 = vmatprep.subr.mxu0 0.0
    %119 = vmatpush1.msra.mxu0 0.0
    %120 = vmatprep.subr.mxu0 0.0
    %121 = vmatpush1.msra.mxu0 0.0
    %122 = vmatprep.subr.mxu0 0.0
    %123 = vmatpush1.msra.mxu0 0.0
    %124 = vmatprep.subr.mxu0 0.0
    %125 = vmatpush1.msra.mxu0 0.0
    %126 = vmatprep.subr.mxu0 0.0
    %127 = vmatpush1.msra.mxu0 0.0
    %128 = vmatprep.subr.mxu0 0.0
    %129 = vmatpush1.msra.mxu0 0.0
    %130 = vmatprep.subr.mxu0 0.0
    %131 = vmatpush1.msra.mxu0 0.0
    %132 = vmatprep.subr.mxu0 0.0
    %133 = vmatpush1.msra.mxu0 0.0
    %134 = vmatprep.subr.mxu0 0.0
    %135 = vmatpush1.msra.mxu0 0.0
    %136 = vmatprep.subr.mxu0 0.0
    %137 = vmatpush1.msra.mxu0 0.0
    %138 = vmatprep.subr.mxu0 0.0
    %139 = vmatpush1.msra.mxu0 0.0
    %140 = vmatprep.subr.mxu0 0.0
    %141 = vmatpush1.msra.mxu0 0.0
    %142 = vmatprep.subr.mxu0 0.0
    %143 = vmatpush1.msra.mxu0 0.0
    %144 = vmatprep.mubr.f32.mxu0 0.0
    %145 = vmatmul.mubr.f32.gmra.mrb[0].mxu0 %v78
    %v146 = vpop.f32.mrb[0].mxu0
    %v147 = vadd.f32 %v74, %v146
    %v148 = vpop.f32.mrb[0].mxu0
    %149 = vdwg.mxu0
    %v150 = vmax.f32 %v147, 0.0
    %v151 = vld [vmem:[#allocation7] sm:$0xff]
    %v152 = vld [vmem:[#allocation7 + $0x8] sm:$0xff]
    %v153 = vld [vmem:[#allocation7 + $0x10] sm:$0xff]
    %v154 = vld [vmem:[#allocation7 + $0x18] sm:$0xff]
    %v155 = vld [vmem:[#allocation7 + $0x20] sm:$0xff]
    %v156 = vld [vmem:[#allocation7 + $0x28] sm:$0xff]
    %v157 = vld [vmem:[#allocation7 + $0x30] sm:$0xff]
    %v158 = vld [vmem:[#allocation7 + $0x38] sm:$0xff]
    %v159 = vld [vmem:[#allocation7 + $0x40] sm:$0xff]
    %v160 = vld [vmem:[#allocation7 + $0x48] sm:$0xff]
    %v161 = vld [vmem:[#allocation7 + $0x50] sm:$0xff]
    %v162 = vld [vmem:[#allocation7 + $0x58] sm:$0xff]
    %v163 = vld [vmem:[#allocation7 + $0x60] sm:$0xff]
    %v164 = vld [vmem:[#allocation7 + $0x68] sm:$0xff]
    %v165 = vld [vmem:[#allocation7 + $0x70] sm:$0xff]
    %v166 = vld [vmem:[#allocation7 + $0x78] sm:$0xff]
    %v167 = vld [vmem:[%s4] sm:$0x1]
    %v169 = vlaneseq
    %v170 = vshrl.u32 %v169, 7
    %v171 = vsub.s32 0, %v170
    %v172 = vrot.slane %v167, %v171
    %174 = vmatprep.subr.mxu0 0.0
    %175 = vmatpush1.msra.mxu0 %v151
    %176 = vmatprep.subr.mxu0 0.0
    %177 = vmatpush1.msra.mxu0 %v152
    %178 = vmatprep.subr.mxu0 0.0
    %179 = vmatpush1.msra.mxu0 %v153
    %180 = vmatprep.subr.mxu0 0.0
    %181 = vmatpush1.msra.mxu0 %v154
    %182 = vmatprep.subr.mxu0 0.0
    %183 = vmatpush1.msra.mxu0 %v155
    %184 = vmatprep.subr.mxu0 0.0
    %185 = vmatpush1.msra.mxu0 %v156
    %186 = vmatprep.subr.mxu0 0.0
    %187 = vmatpush1.msra.mxu0 %v157
    %188 = vmatprep.subr.mxu0 0.0
    %189 = vmatpush1.msra.mxu0 %v158
    %190 = vmatprep.subr.mxu0 0.0
    %191 = vmatpush1.msra.mxu0 %v159
    %192 = vmatprep.subr.mxu0 0.0
    %193 = vmatpush1.msra.mxu0 %v160
    %194 = vmatprep.subr.mxu0 0.0
    %195 = vmatpush1.msra.mxu0 %v161
    %196 = vmatprep.subr.mxu0 0.0
    %197 = vmatpush1.msra.mxu0 %v162
    %198 = vmatprep.subr.mxu0 0.0
    %199 = vmatpush1.msra.mxu0 %v163
    %200 = vmatprep.subr.mxu0 0.0
    %201 = vmatpush1.msra.mxu0 %v164
    %202 = vmatprep.subr.mxu0 0.0
    %203 = vmatpush1.msra.mxu0 %v165
    %204 = vmatprep.subr.mxu0 0.0
    %205 = vmatpush1.msra.mxu0 %v166
    %206 = vmatprep.subr.mxu0 0.0
    %207 = vmatpush1.msra.mxu0 0.0
    %208 = vmatprep.subr.mxu0 0.0
    %209 = vmatpush1.msra.mxu0 0.0
    %210 = vmatprep.subr.mxu0 0.0
    %211 = vmatpush1.msra.mxu0 0.0
    %212 = vmatprep.subr.mxu0 0.0
    %213 = vmatpush1.msra.mxu0 0.0
    %214 = vmatprep.subr.mxu0 0.0
    %215 = vmatpush1.msra.mxu0 0.0
    %216 = vmatprep.subr.mxu0 0.0
    %217 = vmatpush1.msra.mxu0 0.0
    %218 = vmatprep.subr.mxu0 0.0
    %219 = vmatpush1.msra.mxu0 0.0
    %220 = vmatprep.subr.mxu0 0.0
    %221 = vmatpush1.msra.mxu0 0.0
    %222 = vmatprep.subr.mxu0 0.0
    %223 = vmatpush1.msra.mxu0 0.0
    %224 = vmatprep.subr.mxu0 0.0
    %225 = vmatpush1.msra.mxu0 0.0
    %226 = vmatprep.subr.mxu0 0.0
    %227 = vmatpush1.msra.mxu0 0.0
    %228 = vmatprep.subr.mxu0 0.0
    %229 = vmatpush1.msra.mxu0 0.0
    %230 = vmatprep.subr.mxu0 0.0
    %231 = vmatpush1.msra.mxu0 0.0
    %232 = vmatprep.subr.mxu0 0.0
    %233 = vmatpush1.msra.mxu0 0.0
    %234 = vmatprep.subr.mxu0 0.0
    %235 = vmatpush1.msra.mxu0 0.0
    %236 = vmatprep.subr.mxu0 0.0
    %237 = vmatpush1.msra.mxu0 0.0
    %238 = vmatprep.mubr.f32.mxu0 0.0
    %239 = vmatmul.mubr.f32.gmra.mrb[0].mxu0 %v150
    %v240 = vpop.f32.mrb[0].mxu0
    %v241 = vadd.f32 %v172, %v240
    %v242 = vpop.f32.mrb[0].mxu0
    %243 = vdwg.mxu0
    %v244 = vmax.f32 %v241, 0.0
    %v245 = vld [vmem:[%s5] sm:$0x1]
    %v247 = vlaneseq
    %v248 = vshrl.u32 %v247, 7
    %v249 = vsub.s32 0, %v248
    %v250 = vrot.slane %v245, %v249
    %v252 = vmul.f32 %v244, %v250
    %253 = vadd.xlane.f32.xlu0 %v252
    %v254 = vpop.xlane.xlu0 %253
    %s255 = sld [smem:[#allocation2]]
    %v256 = vstv %s255
    %v257 = vadd.f32 %v254, %v256
    %vm258 = vcmask 7168
    %259 = vst.msk [vmem:[%s7] sm:$0xff] %vm258, %v257
    // Predicated region
    $region42: #{tpu_custom_call.1} parent=1 // pred_check
      _
    $region43: #{tpu_custom_call.1} parent=1 // pred_check_branch
      %261 = sbr.rel (0) target = $region45
    $region44: #{tpu_custom_call.1} parent=1 // pred_region
      _
    $region45: #{tpu_custom_call.1} parent=1 // pred_fallthru
      _
    // Predicated region
    $region46: #{tpu_custom_call.1} parent=1 // pred_check
      _
    $region47: #{tpu_custom_call.1} parent=1 // pred_check_branch
      %263 = sbr.rel (0) target = $region49
    $region48: #{tpu_custom_call.1} parent=1 // pred_region
      _
    $region49: #{tpu_custom_call.1} parent=1 // pred_fallthru
      _
    %264 = vsyncpa [#allocation4], 1
    %265 = vsyncpa [#allocation6], 1

</llo_original>
